<compile_context>
chip_gen: v7x
topology: tpu7x:2x2x1
jax: 0.10.0
libtpu: 0.0.40
codegen_flags: <defaults>
</compile_context>

<pallas_src>
from typing import NamedTuple

import jax
import jax.numpy as jnp
from jax.experimental import pallas as pl
from jax.experimental.pallas import tpu as pltpu


def _round_up(x: int, m: int) -> int:
    return (x + m - 1) // m * m


_TB_CANDIDATES = (512, 256, 128, 64, 32, 16)


def _choose_batch_tile(b_pad: int, tb_max: int = 512) -> int:
    """Largest batch tile that divides b_pad exactly (no extra padding waste) and,
    when b_pad >= 32, leaves >= 2 grid steps so the 'parallel' axis can use both
    v7x TensorCores. On v5e/v6e larger tiles simply amortize per-step overhead."""
    for tb in _TB_CANDIDATES:
        if tb > tb_max or tb > b_pad:
            continue
        if b_pad % tb != 0:
            continue
        if b_pad >= 32 and b_pad // tb < 2:
            continue
        return tb
    return 16


class QNetParams(NamedTuple):
    w1p: jax.Array   # (S, H_pad)    bf16, zero-padded past H
    b1p: jax.Array   # (1, H_pad)    f32,  zero-padded past H
    w2p: jax.Array   # (H_pad, A_pad) bf16, zero-padded past H/A
    b2: jax.Array    # (1, A)        f32   (unpadded)
    hidden_dim: int  # real H (static metadata; mark static if jitting over this tuple)


def prepare_qnet_params(w1, b1, w2, b2) -> QNetParams:
    """Pad (lane-dense, 128) and cast the weights ONCE.

    Call at init and after every optimizer update of the unpadded master params.
    The zero pad region must stay zero: garbage there would leak through fc1's
    padded hidden columns into fc2.
    Layout: weights are (in_features, out_features) so the kernel computes x @ W + b.
    """
    S, H = w1.shape
    H2, A = w2.shape
    assert H2 == H, "w1/w2 hidden dims must match"
    H_pad = _round_up(max(H, 128), 128)
    A_pad = _round_up(max(A, 128), 128)

    w1p = jnp.zeros((S, H_pad), jnp.bfloat16).at[:, :H].set(w1.astype(jnp.bfloat16))
    b1p = jnp.zeros((1, H_pad), jnp.float32).at[:, :H].set(
        jnp.reshape(b1, (1, H)).astype(jnp.float32))
    w2p = jnp.zeros((H_pad, A_pad), jnp.bfloat16).at[:H, :A].set(w2.astype(jnp.bfloat16))
    b2p = jnp.reshape(b2, (1, A)).astype(jnp.float32)
    return QNetParams(w1p=w1p, b1p=b1p, w2p=w2p, b2=b2p, hidden_dim=H)


def qnet_kernel(x_ref, w1_ref, b1_ref, w2_ref, b2_ref, out_ref):
    # fc1: (TB, S)bf16 @ (S, H_pad)bf16 on the MXU, f32 accumulate; f32 bias + ReLU.
    x = x_ref[...].astype(jnp.bfloat16)                       # in-kernel cast (VPU slack)
    h = jnp.dot(x, w1_ref[...], preferred_element_type=jnp.float32)
    h = jnp.maximum(h + b1_ref[...], 0.0)                     # f32 epilogue (v5e-safe)
    # fc2: bf16 operands, f32 accumulate; store only the real A columns (unpadded out).
    o = jnp.dot(h.astype(jnp.bfloat16), w2_ref[...],
                preferred_element_type=jnp.float32)
    a = out_ref.shape[-1]
    out_ref[...] = (o[:, :a] + b2_ref[...]).astype(out_ref.dtype)


def qnet_forward(x, params: QNetParams, *, tb_max: int = 512):
    """x: (B, S) float; params from prepare_qnet_params. Returns (B, A) f32 Q-values."""
    B, S = x.shape
    assert S == params.w1p.shape[0], "state_dim mismatch with prepared params"
    H_pad = params.w1p.shape[1]
    A_pad = params.w2p.shape[1]
    A = params.b2.shape[1]
    H = params.hidden_dim

    B_pad = _round_up(max(B, 16), 16)
    TB = _choose_batch_tile(B_pad, tb_max)
    grid = (B_pad // TB,)

    xp = x if B_pad == B else jnp.zeros((B_pad, S), x.dtype).at[:B].set(x)

    # Real (unpadded) work for the advisory cost estimate.
    flops = 2 * B * (S * H + H * A)
    param_bytes = sum(int(p.size) * p.dtype.itemsize
                      for p in (params.w1p, params.b1p, params.w2p, params.b2))
    bytes_accessed = B * S * x.dtype.itemsize + param_bytes + B * A * 4

    out = pl.pallas_call(
        qnet_kernel,
        out_shape=jax.ShapeDtypeStruct((B_pad, A), jnp.float32),
        grid=grid,
        in_specs=[
            pl.BlockSpec((TB, S), lambda i: (i, 0)),          # x: tiled over batch
            pl.BlockSpec((S, H_pad), lambda i: (0, 0)),       # w1: VMEM-resident
            pl.BlockSpec((1, H_pad), lambda i: (0, 0)),       # b1: VMEM-resident
            pl.BlockSpec((H_pad, A_pad), lambda i: (0, 0)),   # w2: VMEM-resident
            pl.BlockSpec((1, A), lambda i: (0, 0)),           # b2: VMEM-resident
        ],
        out_specs=pl.BlockSpec((TB, A), lambda i: (i, 0)),    # unpadded writeback
        compiler_params=pltpu.CompilerParams(
            dimension_semantics=("parallel",),
        ),
        cost_estimate=pl.CostEstimate(
            flops=flops, transcendentals=0, bytes_accessed=bytes_accessed
        ),
    )(xp, params.w1p, params.b1p, params.w2p, params.b2)

    return out if B_pad == B else out[:B]


def init_qnet_params(key, state_dim, hidden_dim, action_dim):
    """Deterministic init mirroring nn.Linear default (uniform +/- 1/sqrt(fan_in)).
    Weights stored as (in_features, out_features)."""
    k1, k2, k3, k4 = jax.random.split(key, 4)
    bound1 = 1.0 / jnp.sqrt(state_dim)
    bound2 = 1.0 / jnp.sqrt(hidden_dim)
    w1 = jax.random.uniform(k1, (state_dim, hidden_dim), jnp.float32, -bound1, bound1)
    b1 = jax.random.uniform(k2, (1, hidden_dim), jnp.float32, -bound1, bound1)
    w2 = jax.random.uniform(k3, (hidden_dim, action_dim), jnp.float32, -bound2, bound2)
    b2 = jax.random.uniform(k4, (1, action_dim), jnp.float32, -bound2, bound2)
    return w1, b1, w2, b2


def _reference(x, w1, b1, w2, b2):
    """Pure-JAX reference matching the kernel's bf16-operand / f32-accumulate path."""
    xb = x.astype(jnp.bfloat16).astype(jnp.float32)
    w1b = w1.astype(jnp.bfloat16).astype(jnp.float32)
    w2b = w2.astype(jnp.bfloat16).astype(jnp.float32)
    h = jnp.maximum(xb @ w1b + b1, 0.0)
    return h.astype(jnp.bfloat16).astype(jnp.float32) @ w2b + b2


if __name__ == "__main__":
    state_dim, hidden_dim, action_dim = 4, 32, 2
    batch = 8

    key = jax.random.PRNGKey(0)
    kx, kx2, kp = jax.random.split(key, 3)
    x = jax.random.normal(kx, (batch, state_dim), dtype=jnp.float32)
    w1, b1, w2, b2 = init_qnet_params(kp, state_dim, hidden_dim, action_dim)

    # Pad/cast the weights once, outside the per-call path.
    params = prepare_qnet_params(w1, b1, w2, b2)

    out = jax.block_until_ready(qnet_forward(x, params))
    assert out.shape == (batch, action_dim)
    assert out.dtype == jnp.float32

    ref_bf16 = _reference(x, w1, b1, w2, b2)
    assert jnp.allclose(out, ref_bf16, atol=2e-2, rtol=2e-2)

    # Sanity vs. full-f32 reference (loose tolerance for bf16 operand rounding).
    ref_f32 = jnp.maximum(x @ w1 + b1, 0.0) @ w2 + b2
    assert jnp.allclose(out, ref_f32, atol=5e-2, rtol=5e-2)

    # Second shape: exercises batch padding + a multi-step ("parallel") grid.
    x2 = jax.random.normal(kx2, (40, state_dim), dtype=jnp.float32)
    out2 = jax.block_until_ready(qnet_forward(x2, params))
    assert out2.shape == (40, action_dim)
    assert jnp.allclose(out2, _reference(x2, w1, b1, w2, b2), atol=2e-2, rtol=2e-2)

    print("KERNEL_OK")
</pallas_src>

<mosaic_0001>
module attributes {stable_mosaic.version = 11 : i64} {
  func.func @qnet_kernel(%arg0: i32, %arg1: memref<16x4xf32, #tpu.memory_space<vmem>>, %arg2: memref<4x128xbf16, #tpu.memory_space<vmem>>, %arg3: memref<1x128xf32, #tpu.memory_space<vmem>>, %arg4: memref<128x128xbf16, #tpu.memory_space<vmem>>, %arg5: memref<1x2xf32, #tpu.memory_space<vmem>>, %arg6: memref<16x2xf32, #tpu.memory_space<vmem>>) attributes {dimension_semantics = [#tpu.dimension_semantics<parallel>], iteration_bounds = array<i64: 1>, scalar_prefetch = 0 : i64, scratch_operands = 0 : i64, tpu.core_type = #tpu.core_type<tc>, window_params = [{transform_indices = @transform_0, window_bounds = array<i64: 16, 4>}, {pipeline_mode = #tpu.pipeline_mode<synchronous>, transform_indices = @transform_1, window_bounds = array<i64: 4, 128>}, {pipeline_mode = #tpu.pipeline_mode<synchronous>, transform_indices = @transform_2, window_bounds = array<i64: 1, 128>}, {pipeline_mode = #tpu.pipeline_mode<synchronous>, transform_indices = @transform_3, window_bounds = array<i64: 128, 128>}, {pipeline_mode = #tpu.pipeline_mode<synchronous>, transform_indices = @transform_4, window_bounds = array<i64: 1, 2>}, {transform_indices = @transform_5, window_bounds = array<i64: 16, 2>}]} {
    %c0 = arith.constant 0 : index
    %c0_0 = arith.constant 0 : index
    %0 = vector.load %arg1[%c0, %c0_0] : memref<16x4xf32, #tpu.memory_space<vmem>>, vector<16x4xf32>
    %1 = arith.truncf %0 : vector<16x4xf32> to vector<16x4xbf16>
    %c0_1 = arith.constant 0 : index
    %c0_2 = arith.constant 0 : index
    %2 = vector.load %arg2[%c0_1, %c0_2] : memref<4x128xbf16, #tpu.memory_space<vmem>>, vector<4x128xbf16>
    %cst = arith.constant dense<0.000000e+00> : vector<16x128xf32>
    %3 = tpu.matmul %1, %2, %cst {dimension_numbers = #tpu.dot_dimension_numbers<[1], [0], [0], [1], [0, 0, 1, 1], [], []>} : vector<16x4xbf16>, vector<4x128xbf16>, vector<16x128xf32> -> vector<16x128xf32>
    %c0_3 = arith.constant 0 : index
    %c0_4 = arith.constant 0 : index
    %4 = vector.load %arg3[%c0_3, %c0_4] : memref<1x128xf32, #tpu.memory_space<vmem>>, vector<1x128xf32>
    %5 = vector.broadcast %4 : vector<1x128xf32> to vector<16x128xf32>
    %6 = arith.addf %3, %5 : vector<16x128xf32>
    %cst_5 = arith.constant 0.000000e+00 : f32
    %7 = vector.broadcast %cst_5 : f32 to vector<16x128xf32>
    %8 = arith.maximumf %6, %7 : vector<16x128xf32>
    %9 = arith.truncf %8 : vector<16x128xf32> to vector<16x128xbf16>
    %c0_6 = arith.constant 0 : index
    %c0_7 = arith.constant 0 : index
    %10 = vector.load %arg4[%c0_6, %c0_7] : memref<128x128xbf16, #tpu.memory_space<vmem>>, vector<128x128xbf16>
    %cst_8 = arith.constant dense<0.000000e+00> : vector<16x128xf32>
    %11 = tpu.matmul %9, %10, %cst_8 {dimension_numbers = #tpu.dot_dimension_numbers<[1], [0], [0], [1], [0, 0, 1, 1], [], []>} : vector<16x128xbf16>, vector<128x128xbf16>, vector<16x128xf32> -> vector<16x128xf32>
    %12 = vector.extract_strided_slice %11 {offsets = [0, 0], sizes = [16, 2], strides = [1, 1]} : vector<16x128xf32> to vector<16x2xf32>
    %c0_9 = arith.constant 0 : index
    %c0_10 = arith.constant 0 : index
    %13 = vector.load %arg5[%c0_9, %c0_10] : memref<1x2xf32, #tpu.memory_space<vmem>>, vector<1x2xf32>
    %14 = vector.broadcast %13 : vector<1x2xf32> to vector<16x2xf32>
    %15 = arith.addf %12, %14 : vector<16x2xf32>
    %c0_11 = arith.constant 0 : index
    %c0_12 = arith.constant 0 : index
    %16 = vector.load %arg6[%c0_11, %c0_12] : memref<16x2xf32, #tpu.memory_space<vmem>>, vector<16x2xf32>
    tpu.vector_store %arg6[%c0_11, %c0_12], %15 {strides = array<i32>} : memref<16x2xf32, #tpu.memory_space<vmem>>, vector<16x2xf32>,
    return
  }
  func.func @transform_0(%arg0: i32) -> (i32, i32) {
    %c0_i32 = arith.constant 0 : i32
    %c0_i32_0 = arith.constant 0 : i32
    return %arg0, %c0_i32 : i32, i32
  }
  func.func @transform_1(%arg0: i32) -> (i32, i32) {
    %c0_i32 = arith.constant 0 : i32
    %c0_i32_0 = arith.constant 0 : i32
    %c0_i32_1 = arith.constant 0 : i32
    return %c0_i32, %c0_i32_0 : i32, i32
  }
  func.func @transform_2(%arg0: i32) -> (i32, i32) {
    %c0_i32 = arith.constant 0 : i32
    %c0_i32_0 = arith.constant 0 : i32
    %c0_i32_1 = arith.constant 0 : i32
    return %c0_i32, %c0_i32_0 : i32, i32
  }
  func.func @transform_3(%arg0: i32) -> (i32, i32) {
    %c0_i32 = arith.constant 0 : i32
    %c0_i32_0 = arith.constant 0 : i32
    %c0_i32_1 = arith.constant 0 : i32
    return %c0_i32, %c0_i32_0 : i32, i32
  }
  func.func @transform_4(%arg0: i32) -> (i32, i32) {
    %c0_i32 = arith.constant 0 : i32
    %c0_i32_0 = arith.constant 0 : i32
    %c0_i32_1 = arith.constant 0 : i32
    return %c0_i32, %c0_i32_0 : i32, i32
  }
  func.func @transform_5(%arg0: i32) -> (i32, i32) {
    %c0_i32 = arith.constant 0 : i32
    %c0_i32_0 = arith.constant 0 : i32
    return %arg0, %c0_i32 : i32, i32
  }
}

</mosaic_0001>

<llo_original>
// kernel: tpu_custom_call.1
$region0: #{tpu_custom_call.1}
  #allocation0 [shape = 'u32[]', space=smem, size = 0x4, offset = 0x4, fixed_abs, tag = 'smem constant byte address 0x4 - core index']
  #allocation1 [shape = 'u32[144,128]{1,0:T(1,128)}', space=vmem, size = 0x12000, scoped, tag = 'internal scratch']
  %s0 = inlined_call_operand.vmem [shape: f32[16,4], index: 0, kind: input, shape index: {}]
  %s1 = inlined_call_operand.vmem [shape: bf16[4,128], index: 1, kind: input, shape index: {}]
  %s2 = inlined_call_operand.vmem [shape: f32[1,128], index: 2, kind: input, shape index: {}]
  %s3 = inlined_call_operand.hbm [shape: bf16[128,128], index: 3, kind: input, shape index: {}]
  %s4 = inlined_call_operand.vmem [shape: f32[1,2], index: 4, kind: input, shape index: {}]
  %s5 = inlined_call_operand.vmem [shape: f32[16,2], index: 5, kind: output, shape index: {}]
  %s6 = sld [smem:[#allocation0]]
  $region34: #{tpu_custom_call.1} parent=0
    _
  %s8 = ssub.s32 1, %s6
  %s9 = scalar_select 0, %s8, %s6
  $region1: #{tpu_custom_call.1} parent=0
    #allocation2 [shape = 'u8[32768]{0}', space=vmem, size = 0x8000, scoped, tag = 'input window, operand 3, single buffered']
    #allocation3 [shape = 's32[1]{0}', space=sflag, size = 0x4, scoped, tag = 'scoped memory for tpu_custom_call.1']
    %10 = vsyncpa [#allocation3], 0
    // Predicated region
    $region2: #{tpu_custom_call.1} parent=1 // pred_check
      _
    $region3: #{tpu_custom_call.1} parent=1 // pred_check_branch
      %12 = sbr.rel (0) target = $region5
    $region4: #{tpu_custom_call.1} parent=1 // pred_region
      _
    $region5: #{tpu_custom_call.1} parent=1 // pred_fallthru
      _
    // Predicated region
    $region6: #{tpu_custom_call.1} parent=1 // pred_check
      _
    $region7: #{tpu_custom_call.1} parent=1 // pred_check_branch
      %14 = sbr.rel (0) target = $region9
    $region8: #{tpu_custom_call.1} parent=1 // pred_region
      _
    $region9: #{tpu_custom_call.1} parent=1 // pred_fallthru
      _
    // Predicated region
    $region10: #{tpu_custom_call.1} parent=1 // pred_check
      _
    $region11: #{tpu_custom_call.1} parent=1 // pred_check_branch
      %16 = sbr.rel (0) target = $region13
    $region12: #{tpu_custom_call.1} parent=1 // pred_region
      _
    $region13: #{tpu_custom_call.1} parent=1 // pred_fallthru
      _
    // Predicated region
    $region14: #{tpu_custom_call.1} parent=1 // pred_check
      _
    $region15: #{tpu_custom_call.1} parent=1 // pred_check_branch
      %18 = sbr.rel (0) target = $region17
    $region16: #{tpu_custom_call.1} parent=1 // pred_region
      %s20 = ssub.s32 1024, 1024
      %21 = vsyncadd [#allocation3], %s20
      %s22 = sshll.u32 [#allocation2], 4
      %s23 = int_to_ptr.vmem [resolvable:$true] %s22
      %28 = dma.hbm_to_vmem [thread:$0]  %s3, 1024, %s23, [#allocation3], 64, 64, 4
    $region17: #{tpu_custom_call.1} parent=1 // pred_fallthru
      _
    // Predicated region
    $region18: #{tpu_custom_call.1} parent=1 // pred_check
      _
    $region19: #{tpu_custom_call.1} parent=1 // pred_check_branch
      %30 = sbr.rel (0) target = $region21
    $region20: #{tpu_custom_call.1} parent=1 // pred_region
      _
    $region21: #{tpu_custom_call.1} parent=1 // pred_fallthru
      _
    // Predicated region
    $region22: #{tpu_custom_call.1} parent=1 // pred_check
      _
    $region23: #{tpu_custom_call.1} parent=1 // pred_check_branch
      %32 = sbr.rel (0) target = $region25
    $region24: #{tpu_custom_call.1} parent=1 // pred_region
      %33 = dma.done [#allocation3], 1024
    $region25: #{tpu_custom_call.1} parent=1 // pred_fallthru
      _
    %v35 = vld [vmem:[%s0] sm:$0xff]
    %v36 = vld [vmem:[%s0 + $0x8] sm:$0xff]
    %v37 = vpack.c.bf16 %v36, %v35
    %v38 = vld [vmem:[%s1] sm:$0x3]
    %v39 = vld [vmem:[%s2] sm:$0x1]
    %v41 = vlaneseq
    %v42 = vshrl.u32 %v41, 7
    %v43 = vsub.s32 0, %v42
    %v44 = vrot.slane %v39, %v43
    %vm46 = vcmask 31744
    %v48 = vsel %vm46, %v37, 0
    %vm50 = vcmask 1041408
    %v52 = vsel %vm50, %v38, 0
    %54 = vmatprep.subr.bf16.mxu0 0
    %55 = vmatpush1.bf16.msra.mxu0 %v52
    %56 = vmatprep.subr.bf16.mxu0 0
    %57 = vmatpush1.bf16.msra.mxu0 0
    %58 = vmatprep.subr.bf16.mxu0 0
    %59 = vmatpush1.bf16.msra.mxu0 0
    %60 = vmatprep.subr.bf16.mxu0 0
    %61 = vmatpush1.bf16.msra.mxu0 0
    %62 = vmatprep.subr.bf16.mxu0 0
    %63 = vmatpush1.bf16.msra.mxu0 0
    %64 = vmatprep.subr.bf16.mxu0 0
    %65 = vmatpush1.bf16.msra.mxu0 0
    %66 = vmatprep.subr.bf16.mxu0 0
    %67 = vmatpush1.bf16.msra.mxu0 0
    %68 = vmatprep.subr.bf16.mxu0 0
    %69 = vmatpush1.bf16.msra.mxu0 0
    %70 = vmatprep.subr.bf16.mxu0 0
    %71 = vmatpush1.bf16.msra.mxu0 0
    %72 = vmatprep.subr.bf16.mxu0 0
    %73 = vmatpush1.bf16.msra.mxu0 0
    %74 = vmatprep.subr.bf16.mxu0 0
    %75 = vmatpush1.bf16.msra.mxu0 0
    %76 = vmatprep.subr.bf16.mxu0 0
    %77 = vmatpush1.bf16.msra.mxu0 0
    %78 = vmatprep.subr.bf16.mxu0 0
    %79 = vmatpush1.bf16.msra.mxu0 0
    %80 = vmatprep.subr.bf16.mxu0 0
    %81 = vmatpush1.bf16.msra.mxu0 0
    %82 = vmatprep.subr.bf16.mxu0 0
    %83 = vmatpush1.bf16.msra.mxu0 0
    %84 = vmatprep.subr.bf16.mxu0 0
    %85 = vmatpush1.bf16.msra.mxu0 0
    %86 = vmatprep.mubr.bf16.mxu0 0
    %87 = vmatmul.mubr.bf16.gmra.mrb[0].mxu0 %v48
    %v88 = vpop.f32.mrb[0].mxu0
    %v89 = vadd.f32 %v44, %v88
    %v90 = vpop.f32.mrb[0].mxu0
    %v91 = vpop.f32.mrb[0].mxu0
    %v92 = vadd.f32 %v44, %v91
    %v93 = vpop.f32.mrb[0].mxu0
    %94 = vdwg.mxu0
    %v95 = vmax.f32 %v89, 0.0
    %v96 = vmax.f32 %v92, 0.0
    %v97 = vpack.c.bf16 %v96, %v95
    %v98 = vld [vmem:[#allocation2] sm:$0xf]
    %v99 = vld [vmem:[#allocation2 + $0x4] sm:$0xf]
    %v100 = vld [vmem:[#allocation2 + $0x8] sm:$0xf]
    %v101 = vld [vmem:[#allocation2 + $0xc] sm:$0xf]
    %v102 = vld [vmem:[#allocation2 + $0x10] sm:$0xf]
    %v103 = vld [vmem:[#allocation2 + $0x14] sm:$0xf]
    %v104 = vld [vmem:[#allocation2 + $0x18] sm:$0xf]
    %v105 = vld [vmem:[#allocation2 + $0x1c] sm:$0xf]
    %v106 = vld [vmem:[#allocation2 + $0x20] sm:$0xf]
    %v107 = vld [vmem:[#allocation2 + $0x24] sm:$0xf]
    %v108 = vld [vmem:[#allocation2 + $0x28] sm:$0xf]
    %v109 = vld [vmem:[#allocation2 + $0x2c] sm:$0xf]
    %v110 = vld [vmem:[#allocation2 + $0x30] sm:$0xf]
    %v111 = vld [vmem:[#allocation2 + $0x34] sm:$0xf]
    %v112 = vld [vmem:[#allocation2 + $0x38] sm:$0xf]
    %v113 = vld [vmem:[#allocation2 + $0x3c] sm:$0xf]
    %v130 = vunpack.c.l.b16 %v98
    %v131 = vunpack.c.l.b16 %v99
    %v132 = vunpack.c.l.b16 %v100
    %v133 = vunpack.c.l.b16 %v101
    %v134 = vunpack.c.l.b16 %v102
    %v135 = vunpack.c.l.b16 %v103
    %v136 = vunpack.c.l.b16 %v104
    %v137 = vunpack.c.l.b16 %v105
    %v138 = vunpack.c.l.b16 %v106
    %v139 = vunpack.c.l.b16 %v107
    %v140 = vunpack.c.l.b16 %v108
    %v141 = vunpack.c.l.b16 %v109
    %v142 = vunpack.c.l.b16 %v110
    %v143 = vunpack.c.l.b16 %v111
    %v144 = vunpack.c.l.b16 %v112
    %v145 = vunpack.c.l.b16 %v113
    %v146 = vpack.c.b16 %v131, %v130
    %v147 = vpack.c.b16 %v133, %v132
    %v148 = vpack.c.b16 %v135, %v134
    %v149 = vpack.c.b16 %v137, %v136
    %v150 = vpack.c.b16 %v139, %v138
    %v151 = vpack.c.b16 %v141, %v140
    %v152 = vpack.c.b16 %v143, %v142
    %v153 = vpack.c.b16 %v145, %v144
    %162 = vmatprep.subr.bf16.mxu0 0
    %163 = vmatpush1.bf16.msra.mxu0 %v146
    %164 = vmatprep.subr.bf16.mxu0 0
    %165 = vmatpush1.bf16.msra.mxu0 %v147
    %166 = vmatprep.subr.bf16.mxu0 0
    %167 = vmatpush1.bf16.msra.mxu0 %v148
    %168 = vmatprep.subr.bf16.mxu0 0
    %169 = vmatpush1.bf16.msra.mxu0 %v149
    %170 = vmatprep.subr.bf16.mxu0 0
    %171 = vmatpush1.bf16.msra.mxu0 %v150
    %172 = vmatprep.subr.bf16.mxu0 0
    %173 = vmatpush1.bf16.msra.mxu0 %v151
    %174 = vmatprep.subr.bf16.mxu0 0
    %175 = vmatpush1.bf16.msra.mxu0 %v152
    %176 = vmatprep.subr.bf16.mxu0 0
    %177 = vmatpush1.bf16.msra.mxu0 %v153
    %178 = vmatprep.subr.bf16.mxu0 0
    %179 = vmatpush1.bf16.msra.mxu0 0
    %180 = vmatprep.subr.bf16.mxu0 0
    %181 = vmatpush1.bf16.msra.mxu0 0
    %182 = vmatprep.subr.bf16.mxu0 0
    %183 = vmatpush1.bf16.msra.mxu0 0
    %184 = vmatprep.subr.bf16.mxu0 0
    %185 = vmatpush1.bf16.msra.mxu0 0
    %186 = vmatprep.subr.bf16.mxu0 0
    %187 = vmatpush1.bf16.msra.mxu0 0
    %188 = vmatprep.subr.bf16.mxu0 0
    %189 = vmatpush1.bf16.msra.mxu0 0
    %190 = vmatprep.subr.bf16.mxu0 0
    %191 = vmatpush1.bf16.msra.mxu0 0
    %192 = vmatprep.subr.bf16.mxu0 0
    %193 = vmatpush1.bf16.msra.mxu0 0
    %194 = vmatprep.mubr.bf16.mxu0 0
    %195 = vmatmul.mubr.bf16.gmra.mrb[0].mxu0 %v97
    %v196 = vpop.f32.mrb[0].mxu0
    %v197 = vadd.f32 0.0, %v196
    %v198 = vpop.f32.mrb[0].mxu0
    %v199 = vpop.f32.mrb[0].mxu0
    %v200 = vadd.f32 0.0, %v199
    %v201 = vpop.f32.mrb[0].mxu0
    %202 = vdwg.mxu0
    %v203 = vld [vmem:[%s4] sm:$0x1]
    %v205 = vlaneseq
    %v206 = vshrl.u32 %v205, 7
    %v207 = vsub.s32 0, %v206
    %v208 = vrot.slane %v203, %v207
    %v210 = vadd.f32 %v197, %v208
    %v211 = vadd.f32 %v200, %v208
    %vm212 = vcmask 15360
    %213 = vst.msk [vmem:[%s5] sm:$0xff] %vm212, %v210
    %214 = vst.msk [vmem:[%s5 + $0x8] sm:$0xff] %vm212, %v211
    // Predicated region
    $region26: #{tpu_custom_call.1} parent=1 // pred_check
      _
    $region27: #{tpu_custom_call.1} parent=1 // pred_check_branch
      %216 = sbr.rel (0) target = $region29
    $region28: #{tpu_custom_call.1} parent=1 // pred_region
      _
    $region29: #{tpu_custom_call.1} parent=1 // pred_fallthru
      _
    // Predicated region
    $region30: #{tpu_custom_call.1} parent=1 // pred_check
      _
    $region31: #{tpu_custom_call.1} parent=1 // pred_check_branch
      %218 = sbr.rel (0) target = $region33
    $region32: #{tpu_custom_call.1} parent=1 // pred_region
      _
    $region33: #{tpu_custom_call.1} parent=1 // pred_fallthru
      _
    %219 = vsyncpa [#allocation3], 1

</llo_original>
